<compile_context>
chip_gen: v7x
topology: tpu7x:2x2x1
jax: 0.10.0
libtpu: 0.0.40
codegen_flags: <defaults>
</compile_context>

<pallas_src>
import math
from functools import partial

import jax
import jax.numpy as jnp
from jax.experimental import pallas as pl
from jax.experimental.pallas import tpu as pltpu

_LANE = 128


def _identity_kernel(x_ref, o_ref):
    # Straight copy of the current lane-dense tile.
    o_ref[...] = x_ref[...]


def _hw_tile_config():
    """Per-generation (tile_bytes, vmem_limit_bytes).

    v6e/v7x have the HBM bandwidth where ~8 MiB tiles amortize the ~0.35 us
    per-grid-step cost (4 live double-buffered tiles ~= 32 MiB); v5e (and
    unknown chips) keep the conservative 4 MiB tile / 32 MiB scoped VMEM.
    """
    try:
        kind = jax.devices()[0].device_kind.lower()
    except Exception:  # pragma: no cover - defensive, e.g. no devices yet
        kind = ""
    if "v7" in kind:
        return 8 * 1024 * 1024, 48 * 1024 * 1024   # 64 MiB physical VMEM
    if "v6" in kind:
        return 8 * 1024 * 1024, 64 * 1024 * 1024   # 128 MiB physical VMEM
    return 4 * 1024 * 1024, 32 * 1024 * 1024        # v5e / default


def _sublane(dtype) -> int:
    # dtype-aware sublane packing: 8 rows for 32-bit, 16 for bf16/fp16,
    # 32 for int8/fp8, so blocks map to full packed vregs.
    return max(8, 32 // jnp.dtype(dtype).itemsize)


@partial(jax.jit, static_argnames=("alias_in_out",))
def identity(x, *, alias_in_out=False):
    """Pallas identity: returns an array equal to x (same shape/dtype).

    alias_in_out=True matches torch.nn.Identity semantics exactly (the same
    tensor is returned), so no kernel / no HBM traffic is needed at all.
    """
    if alias_in_out:
        return x

    orig_shape = x.shape
    total = math.prod(orig_shape)
    if total == 0:
        return x  # nothing to copy

    itemsize = jnp.dtype(x.dtype).itemsize
    sublane = _sublane(x.dtype)
    tile_bytes, vmem_limit = _hw_tile_config()

    flat = x.reshape(total)

    # ---- pick a lane-dense width (multiple of 128) -------------------------
    lane = None
    for cand in (1024, 512, 256, 128):
        if total % cand == 0 and total // cand >= sublane:
            lane = cand
            break
    if lane is None:
        for cand in (1024, 512, 256, 128):
            if total % cand == 0:
                lane = cand
                break
    pad = 0
    if lane is None:
        # Ragged size: pad the flat tail to a lane multiple. jit keeps
        # pad + kernel + trailing slice in one executable.
        lane = _LANE
        padded_total = -(-total // lane) * lane
        pad = padded_total - total
        flat = jnp.pad(flat, (0, pad))
    padded_total = total + pad
    rows = padded_total // lane
    x2 = flat.reshape(rows, lane)

    # ---- row block: largest sublane multiple within the tile budget --------
    bytes_per_row = lane * itemsize
    cap_rows = max(sublane, (tile_bytes // bytes_per_row) // sublane * sublane)
    if rows <= sublane:
        # Fewer rows than one packed sublane group: the block must equal the
        # full array dim (legal even though it is smaller than (8,128); do
        # not "round up" this case — block == full dim is what makes it ok).
        block_rows = rows
    else:
        block_rows = min(cap_rows, (rows // sublane) * sublane)
        if block_rows >= rows and rows >= 2 * sublane:
            # Force >=2 blocks so dimension_semantics=("parallel",) can split
            # the copy across both TensorCores on v7x.
            half = -(-rows // 2)
            block_rows = min(block_rows, -(-half // sublane) * sublane)
    # Ragged final block is masked by Pallas; no row padding, no divisor hunt.
    num_blocks = -(-rows // block_rows)

    spec = pl.BlockSpec((block_rows, lane), lambda i: (i, 0))

    out = pl.pallas_call(
        _identity_kernel,
        out_shape=jax.ShapeDtypeStruct((rows, lane), x2.dtype),
        grid_spec=pltpu.PrefetchScalarGridSpec(
            num_scalar_prefetch=0,
            grid=(num_blocks,),
            in_specs=[spec],
            out_specs=spec,
        ),
        compiler_params=pltpu.CompilerParams(
            dimension_semantics=("parallel",),
            vmem_limit_bytes=vmem_limit,
        ),
        cost_estimate=pl.CostEstimate(
            flops=0,
            transcendentals=0,
            bytes_accessed=2 * padded_total * itemsize,
        ),
    )(x2)

    out_flat = out.reshape(padded_total)
    if pad:
        out_flat = out_flat[:total]
    return out_flat.reshape(orig_shape)


if __name__ == "__main__":
    key = jax.random.PRNGKey(0)
    k0, k1, k2, k3 = jax.random.split(key, 4)

    # NCHW input, as in the PyTorch module's typical usage.
    x = jax.random.normal(k0, (2, 4, 16, 16), dtype=jnp.float32)
    y = identity(x)
    jax.block_until_ready(y)
    assert y.shape == x.shape and y.dtype == x.dtype
    assert bool(jnp.all(y == x))

    # Ragged 1-D input exercises the lane-padding + trailing-slice path.
    x1d = jax.random.normal(k1, (1000,), dtype=jnp.float32)
    y1d = identity(x1d)
    jax.block_until_ready(y1d)
    assert y1d.shape == x1d.shape and y1d.dtype == x1d.dtype
    assert bool(jnp.all(y1d == x1d))

    # bf16 input exercises the dtype-aware (16,128) sublane packing.
    xbf = jax.random.normal(k2, (4, 16, 32), dtype=jnp.bfloat16)
    ybf = identity(xbf)
    jax.block_until_ready(ybf)
    assert ybf.shape == xbf.shape and ybf.dtype == xbf.dtype
    assert bool(jnp.all(ybf == xbf))

    # Shape giving a 2-block grid with a masked (ragged) final block.
    xm = jax.random.normal(k3, (24, 1024), dtype=jnp.float32)
    ym = identity(xm)
    jax.block_until_ready(ym)
    assert ym.shape == xm.shape and ym.dtype == xm.dtype
    assert bool(jnp.all(ym == xm))

    # Aliased path: exact torch.nn.Identity semantics, zero copies.
    ya = identity(x, alias_in_out=True)
    jax.block_until_ready(ya)
    assert bool(jnp.all(ya == x))

    print("KERNEL_OK")
</pallas_src>

<mosaic_0001>
module attributes {stable_mosaic.version = 11 : i64} {
  func.func @_identity_kernel(%arg0: i32, %arg1: memref<8x256xf32, #tpu.memory_space<vmem>>, %arg2: memref<8x256xf32, #tpu.memory_space<vmem>>) attributes {dimension_semantics = [#tpu.dimension_semantics<parallel>], iteration_bounds = array<i64: 1>, scalar_prefetch = 0 : i64, scratch_operands = 0 : i64, tpu.core_type = #tpu.core_type<tc>, window_params = [{transform_indices = @transform_0, window_bounds = array<i64: 8, 256>}, {transform_indices = @transform_1, window_bounds = array<i64: 8, 256>}]} {
    %c0 = arith.constant 0 : index
    %c0_0 = arith.constant 0 : index
    %0 = vector.load %arg1[%c0, %c0_0] : memref<8x256xf32, #tpu.memory_space<vmem>>, vector<8x256xf32>
    %c0_1 = arith.constant 0 : index
    %c0_2 = arith.constant 0 : index
    %1 = vector.load %arg2[%c0_1, %c0_2] : memref<8x256xf32, #tpu.memory_space<vmem>>, vector<8x256xf32>
    tpu.vector_store %arg2[%c0_1, %c0_2], %0 {strides = array<i32>} : memref<8x256xf32, #tpu.memory_space<vmem>>, vector<8x256xf32>,
    return
  }
  func.func @transform_0(%arg0: i32) -> (i32, i32) {
    %c0_i32 = arith.constant 0 : i32
    %c0_i32_0 = arith.constant 0 : i32
    return %arg0, %c0_i32 : i32, i32
  }
  func.func @transform_1(%arg0: i32) -> (i32, i32) {
    %c0_i32 = arith.constant 0 : i32
    %c0_i32_0 = arith.constant 0 : i32
    return %arg0, %c0_i32 : i32, i32
  }
}

</mosaic_0001>

<llo_original>
// kernel: identity.1
$region0: #{identity.1}
  #allocation0 [shape = 'u32[]', space=smem, size = 0x4, offset = 0x4, fixed_abs, tag = 'smem constant byte address 0x4 - core index']
  #allocation1 [shape = 'u32[144,128]{1,0:T(1,128)}', space=vmem, size = 0x12000, scoped, tag = 'internal scratch']
  %s0 = inlined_call_operand.vmem [shape: f32[8,256], index: 0, kind: input, shape index: {}]
  %s1 = inlined_call_operand.vmem [shape: f32[8,256], index: 1, kind: output, shape index: {}]
  %s2 = sld [smem:[#allocation0]]
  $region14: #{identity.1} parent=0
    _
  %s4 = ssub.s32 1, %s2
  %s5 = scalar_select 0, %s4, %s2
  // Predicated region
  $region2: #{identity.1} parent=0 // pred_check
    _
  $region3: #{identity.1} parent=0 // pred_check_branch
    %7 = sbr.rel (0) target = $region5
  $region4: #{identity.1} parent=0 // pred_region
    _
  $region5: #{identity.1} parent=0 // pred_fallthru
    _
  %v8 = vld [vmem:[%s0] sm:$0xff]
  %v9 = vld [vmem:[%s0 + $0x8] sm:$0xff]
  %10 = vst [vmem:[%s1] sm:$0xff] %v8
  %11 = vst [vmem:[%s1 + $0x8] sm:$0xff] %v9
  // Predicated region
  $region6: #{identity.1} parent=0 // pred_check
    _
  $region7: #{identity.1} parent=0 // pred_check_branch
    %13 = sbr.rel (0) target = $region9
  $region8: #{identity.1} parent=0 // pred_region
    _
  $region9: #{identity.1} parent=0 // pred_fallthru
    _
  // Predicated region
  $region10: #{identity.1} parent=0 // pred_check
    _
  $region11: #{identity.1} parent=0 // pred_check_branch
    %15 = sbr.rel (0) target = $region13
  $region12: #{identity.1} parent=0 // pred_region
    _
  $region13: #{identity.1} parent=0 // pred_fallthru
    _

</llo_original>
